<compile_context>
chip_gen: v7x
topology: tpu7x:2x2x1
jax: 0.10.0
libtpu: 0.0.40
codegen_flags: <defaults>
</compile_context>

<pallas_src>
import functools
import math

import jax
import jax.numpy as jnp
from jax import lax
from jax.experimental import pallas as pl
from jax.experimental.pallas import tpu as pltpu


# ---------------------------------------------------------------------------
# Kernel bodies
# ---------------------------------------------------------------------------

def _flash_step(q, k, v, o_ref, m_ref, l_ref, acc_ref, *, scale_q,
                use_bf16_matmul):
    """One (b, ti, si) grid step of online-softmax attention.

    q: [B, C, Tb]   k, v: [B, C, Sb]   o_ref: [B, C, Tb]
    m_ref, l_ref: [B, 1, Tb] f32 scratch   acc_ref: [B, C, Tb] f32 scratch
    """
    si = pl.program_id(2)

    @pl.when(si == 0)
    def _():
        m_ref[...] = jnp.full_like(m_ref, -jnp.inf)
        l_ref[...] = jnp.zeros_like(l_ref)
        acc_ref[...] = jnp.zeros_like(acc_ref)

    # (q*s)·(k*s) with s = ch**-0.25  ==  q·k / sqrt(ch): fold into q only
    # (f32 accumulation makes this exactly equivalent).
    qs = q * jnp.asarray(scale_q, q.dtype)
    if use_bf16_matmul and qs.dtype == jnp.float32:
        # ~3x MXU rate on all generations; small logit drift (flag off by default).
        qs = qs.astype(jnp.bfloat16)
        k = k.astype(jnp.bfloat16)

    # Transposed logits: w[b, s, t] = sum_c k[b, c, s] * q[b, c, t].
    # T stays on the lane axis -> lane-dense output, cheap sublane broadcasts,
    # and the PV dot below is NN form (no transpose of the big [Sb, Tb] tile).
    w = lax.dot_general(k, qs, (((1,), (1,)), ((0,), (0,))),
                        preferred_element_type=jnp.float32)        # [B, Sb, Tb]

    m_prev = m_ref[...]                                            # [B, 1, Tb]
    m_new = jnp.maximum(m_prev, jnp.max(w, axis=1, keepdims=True))
    alpha = jnp.exp(m_prev - m_new)                                # [B, 1, Tb]
    p = jnp.exp(w - m_new)                                         # [B, Sb, Tb] f32
    l_ref[...] = alpha * l_ref[...] + jnp.sum(p, axis=1, keepdims=True)

    # Match the reference: probabilities cast back to the value dtype before PV.
    pv = lax.dot_general(v, p.astype(v.dtype), (((2,), (1,)), ((0,), (0,))),
                         preferred_element_type=jnp.float32)       # [B, C, Tb]
    acc_ref[...] = alpha * acc_ref[...] + pv
    m_ref[...] = m_new

    @pl.when(si == pl.num_programs(2) - 1)
    def _():
        # Dropout with p=0.0 (module default) is the identity.
        o_ref[...] = (acc_ref[...] *
                      pl.reciprocal(l_ref[...], approx=True)).astype(o_ref.dtype)


def _self_attn_kernel(q_ref, k_ref, v_ref, o_ref, m_ref, l_ref, acc_ref, *,
                      scale_q, use_bf16_matmul):
    _flash_step(q_ref[...], k_ref[...], v_ref[...], o_ref, m_ref, l_ref, acc_ref,
                scale_q=scale_q, use_bf16_matmul=use_bf16_matmul)


def _cross_attn_kernel(q_ref, kv_ref, o_ref, m_ref, l_ref, acc_ref, *,
                       scale_q, use_bf16_matmul):
    kv = kv_ref[...]            # single DMA'd buffer reused as both K and V
    _flash_step(q_ref[...], kv, kv, o_ref, m_ref, l_ref, acc_ref,
                scale_q=scale_q, use_bf16_matmul=use_bf16_matmul)


# ---------------------------------------------------------------------------
# Block / VMEM budgeting
# ---------------------------------------------------------------------------

def _largest_divisor_leq(n, cap):
    cap = max(1, min(cap, n))
    for d in range(cap, 0, -1):
        if n % d == 0:
            return d
    return 1


def _vmem_capacity_bytes():
    # Generation dispatch: v5e/v6e report 128 MiB, v7x 64 MiB per TensorCore.
    try:
        cap = int(getattr(pltpu.get_tpu_info(), "vmem_capacity_bytes", 0))
        if cap > 0:
            return cap
    except Exception:
        pass
    return 64 * 1024 * 1024     # conservative (v7x-sized) fallback


def _pick_blocks(bh, ch, t, s, in_dsize, budget, self_attn):
    """S-aware, VMEM-budget-driven (b_blk, t_blk, s_blk) selection."""
    # T candidates: full extent, plus lane-dense (multiple-of-128) tiles.
    t_cands = [t] + [c for c in (512, 256, 128)
                     if t % 128 == 0 and t % c == 0 and c < t]
    # S candidates: prefer the full extent (single-pass softmax); fall back to
    # flash-style S tiles only when the full-S logits slab would not fit.
    s_cands = [s] + [c for c in (1024, 512, 256, 128)
                     if s % 128 == 0 and s % c == 0 and c < s]
    # Head-batch candidates: big batches amortize the ~0.35us/step overhead;
    # allow even bigger batches when T < 128 (masked-store regime, tiny tiles).
    caps = (64, 32, 16, 8, 4, 2, 1) if t < 128 else (16, 8, 4, 2, 1)
    b_cands = sorted({_largest_divisor_leq(bh, c) for c in caps}, reverse=True)

    kv_streams = 2 if self_attn else 1

    def footprint(b, tb, sb):
        io = 2 * b * ch * (2 * tb + kv_streams * sb) * in_dsize  # dbl-buffered q,o,k[,v]
        scratch = 4 * b * tb * (ch + 2)                          # f32 acc + m + l
        interm = 3 * 4 * b * tb * sb                             # w, p (+ slack) in f32
        return io + scratch + interm

    best_key, best = None, None
    min_fp, min_cfg = None, None
    for tb in t_cands:
        for sb in s_cands:
            for b in b_cands:
                fp = footprint(b, tb, sb)
                if fp <= budget:
                    # Priority: decent head batch (amortize step overhead), then
                    # avoid S tiling, then large/lane-dense T tile, then spend
                    # leftover budget on an even bigger head batch.
                    key = (min(b, 8), sb, tb, b)
                    if best_key is None or key > best_key:
                        best_key, best = key, (b, tb, sb)
                if min_fp is None or fp < min_fp:
                    min_fp, min_cfg = fp, (b, tb, sb)
    b_blk, t_blk, s_blk = best if best is not None else min_cfg

    # Megacore: if the parallel grid collapses to one step, split the head
    # batch so a second TensorCore (v7x) has work; on single-TC chips this
    # costs one extra grid step (~0.35us), which is noise.
    if bh // b_blk == 1 and t // t_blk == 1 and bh > 1:
        b_blk = _largest_divisor_leq(bh, max(1, b_blk // 2))
    return b_blk, t_blk, s_blk


# ---------------------------------------------------------------------------
# pallas_call wrapper
# ---------------------------------------------------------------------------

def _attention(src, y, bh, ch, t, scale_q, use_bf16_matmul, block_sizes=None):
    """src: [bh,3,ch,t] (self) or [bh,ch,t] (cross, with y=[bh,ch,S])."""
    self_attn = y is None
    s = t if self_attn else y.shape[-1]
    dtype = src.dtype
    in_dsize = jnp.dtype(dtype).itemsize

    cap = _vmem_capacity_bytes()
    vmem_limit = max(32 << 20, min(int(cap * 0.80), cap - (8 << 20)))
    if block_sizes is not None:
        b_blk, t_blk, s_blk = block_sizes
    else:
        b_blk, t_blk, s_blk = _pick_blocks(bh, ch, t, s, in_dsize,
                                           int(vmem_limit * 0.85), self_attn)
    assert bh % b_blk == 0 and t % t_blk == 0 and s % s_blk == 0
    grid = (bh // b_blk, t // t_blk, s // s_blk)

    if self_attn:
        # Same HBM buffer passed three times; the BlockSpecs select the q/k/v
        # plane via the block index on the size-3 axis -- zero pre-kernel copies.
        in_specs = [
            pl.BlockSpec((b_blk, None, ch, t_blk), lambda b, ti, si: (b, 0, 0, ti)),
            pl.BlockSpec((b_blk, None, ch, s_blk), lambda b, ti, si: (b, 1, 0, si)),
            pl.BlockSpec((b_blk, None, ch, s_blk), lambda b, ti, si: (b, 2, 0, si)),
        ]
        operands = (src, src, src)
        kernel = functools.partial(_self_attn_kernel, scale_q=scale_q,
                                   use_bf16_matmul=use_bf16_matmul)
    else:
        in_specs = [
            pl.BlockSpec((b_blk, ch, t_blk), lambda b, ti, si: (b, 0, ti)),
            pl.BlockSpec((b_blk, ch, s_blk), lambda b, ti, si: (b, 0, si)),
        ]
        operands = (src, y)
        kernel = functools.partial(_cross_attn_kernel, scale_q=scale_q,
                                   use_bf16_matmul=use_bf16_matmul)

    out_spec = pl.BlockSpec((b_blk, ch, t_blk), lambda b, ti, si: (b, 0, ti))

    return pl.pallas_call(
        kernel,
        out_shape=jax.ShapeDtypeStruct((bh, ch, t), dtype),
        grid_spec=pltpu.PrefetchScalarGridSpec(
            num_scalar_prefetch=0,
            grid=grid,
            in_specs=in_specs,
            out_specs=out_spec,
            scratch_shapes=[
                pltpu.VMEM((b_blk, 1, t_blk), jnp.float32),    # running max
                pltpu.VMEM((b_blk, 1, t_blk), jnp.float32),    # running sum
                pltpu.VMEM((b_blk, ch, t_blk), jnp.float32),   # output accumulator
            ],
        ),
        compiler_params=pltpu.CompilerParams(
            dimension_semantics=("parallel", "parallel", "arbitrary"),
            vmem_limit_bytes=int(vmem_limit),
        ),
    )(*operands)


def qkv_attention_legacy(qkv, y, n_heads, *, use_bf16_matmul=False,
                         block_sizes=None):
    """Pallas equivalent of QKVAttentionLegacy(n_heads).forward(qkv, y)."""
    bs, width, length = qkv.shape
    if y is None:
        assert width % (3 * n_heads) == 0
        ch = width // (3 * n_heads)
        src = qkv.reshape(bs * n_heads, 3, ch, length)     # free contiguous reshape
        y_r = None
    else:
        assert width % n_heads == 0
        ch = width // n_heads
        src = qkv.reshape(bs * n_heads, ch, length)        # free contiguous reshape
        y_r = y.reshape(bs * n_heads, ch, -1)              # shared K/V buffer
    scale_q = 1.0 / math.sqrt(ch)                          # folded double scaling
    a = _attention(src, y_r, bs * n_heads, ch, length, scale_q,
                   use_bf16_matmul, block_sizes)           # [bs*n_heads, ch, T]
    return a.reshape(bs, -1, length)


# ---------------------------------------------------------------------------
# Pure-JAX reference (mirrors the PyTorch code) and tests
# ---------------------------------------------------------------------------

def _reference(qkv, y, n_heads):
    bs, width, length = qkv.shape
    if y is None:
        ch = width // (3 * n_heads)
        qkv_r = qkv.reshape(bs * n_heads, ch * 3, length)
        q, k, v = qkv_r[:, :ch], qkv_r[:, ch:2 * ch], qkv_r[:, 2 * ch:]
    else:
        ch = width // n_heads
        q = qkv.reshape(bs * n_heads, ch, length)
        k = v = y.reshape(bs * n_heads, ch, -1)
    scale = 1.0 / math.sqrt(math.sqrt(ch))
    w = jnp.einsum('bct,bcs->bts', q * scale, k * scale)
    w = jax.nn.softmax(w.astype(jnp.float32), axis=-1).astype(w.dtype)
    a = jnp.einsum('bts,bcs->bct', w, v)
    return a.reshape(bs, -1, length)


if __name__ == "__main__":
    key = jax.random.PRNGKey(0)
    k1, k2, k3, k4 = jax.random.split(key, 4)

    # 1) Self-attention path (y is None): qkv is [N, H*3*C, T]
    n_heads, ch, bs, T = 2, 8, 2, 16
    qkv_self = jax.random.normal(k1, (bs, n_heads * 3 * ch, T), dtype=jnp.float32)
    out_self = qkv_attention_legacy(qkv_self, None, n_heads)
    jax.block_until_ready(out_self)
    ref_self = _reference(qkv_self, None, n_heads)
    assert out_self.shape == (bs, n_heads * ch, T)
    # Tolerance accounts for the EUP approximate reciprocal in the softmax.
    assert jnp.allclose(out_self, ref_self, atol=2e-3, rtol=2e-3)

    # 2) Cross-attention path (y given): qkv is [N, H*C, T], y is [N, H*C, S]
    S = 8
    q_only = jax.random.normal(k2, (bs, n_heads * ch, T), dtype=jnp.float32)
    y_in = jax.random.normal(k3, (bs, n_heads * ch, S), dtype=jnp.float32)
    out_cross = qkv_attention_legacy(q_only, y_in, n_heads)
    jax.block_until_ready(out_cross)
    ref_cross = _reference(q_only, y_in, n_heads)
    assert out_cross.shape == (bs, n_heads * ch, T)
    assert jnp.allclose(out_cross, ref_cross, atol=2e-3, rtol=2e-3)

    # 3) Flash path: force T and S tiling (multi-step online softmax) and check.
    n_heads2, ch2, bs2, T2 = 2, 16, 1, 256
    qkv_big = jax.random.normal(k4, (bs2, n_heads2 * 3 * ch2, T2), dtype=jnp.float32)
    out_big = qkv_attention_legacy(qkv_big, None, n_heads2,
                                   block_sizes=(2, 128, 128))   # grid (1, 2, 2)
    jax.block_until_ready(out_big)
    ref_big = _reference(qkv_big, None, n_heads2)
    assert out_big.shape == (bs2, n_heads2 * ch2, T2)
    assert jnp.allclose(out_big, ref_big, atol=2e-3, rtol=2e-3)

    print("KERNEL_OK")
</pallas_src>

<mosaic_0001>
module attributes {stable_mosaic.version = 11 : i64} {
  func.func @_self_attn_kernel(%arg0: i32, %arg1: i32, %arg2: i32, %arg3: memref<2x1x8x16xf32, #tpu.memory_space<vmem>>, %arg4: memref<2x1x8x16xf32, #tpu.memory_space<vmem>>, %arg5: memref<2x1x8x16xf32, #tpu.memory_space<vmem>>, %arg6: memref<2x8x16xf32, #tpu.memory_space<vmem>>, %arg7: memref<2x1x16xf32, #tpu.memory_space<vmem>>, %arg8: memref<2x1x16xf32, #tpu.memory_space<vmem>>, %arg9: memref<2x8x16xf32, #tpu.memory_space<vmem>>) attributes {dimension_semantics = [#tpu.dimension_semantics<parallel>, #tpu.dimension_semantics<parallel>, #tpu.dimension_semantics<arbitrary>], iteration_bounds = array<i64: 2, 1, 1>, scalar_prefetch = 0 : i64, scratch_operands = 3 : i64, tpu.core_type = #tpu.core_type<tc>, window_params = [{transform_indices = @transform_0, window_bounds = array<i64: 2, 1, 8, 16>}, {transform_indices = @transform_1, window_bounds = array<i64: 2, 1, 8, 16>}, {transform_indices = @transform_2, window_bounds = array<i64: 2, 1, 8, 16>}, {transform_indices = @transform_3, window_bounds = array<i64: 2, 8, 16>}]} {
    %c0 = arith.constant 0 : index
    %c0_0 = arith.constant 0 : index
    %c0_1 = arith.constant 0 : index
    %c0_2 = arith.constant 0 : index
    %0 = vector.load %arg3[%c0, %c0_0, %c0_1, %c0_2] : memref<2x1x8x16xf32, #tpu.memory_space<vmem>>, vector<2x1x8x16xf32>
    %1 = vector.shape_cast %0 : vector<2x1x8x16xf32> to vector<2x8x16xf32>
    %c0_3 = arith.constant 0 : index
    %c0_4 = arith.constant 0 : index
    %c0_5 = arith.constant 0 : index
    %c0_6 = arith.constant 0 : index
    %2 = vector.load %arg4[%c0_3, %c0_4, %c0_5, %c0_6] : memref<2x1x8x16xf32, #tpu.memory_space<vmem>>, vector<2x1x8x16xf32>
    %3 = vector.shape_cast %2 : vector<2x1x8x16xf32> to vector<2x8x16xf32>
    %c0_7 = arith.constant 0 : index
    %c0_8 = arith.constant 0 : index
    %c0_9 = arith.constant 0 : index
    %c0_10 = arith.constant 0 : index
    %4 = vector.load %arg5[%c0_7, %c0_8, %c0_9, %c0_10] : memref<2x1x8x16xf32, #tpu.memory_space<vmem>>, vector<2x1x8x16xf32>
    %5 = vector.shape_cast %4 : vector<2x1x8x16xf32> to vector<2x8x16xf32>
    %c0_i32 = arith.constant 0 : i32
    %6 = arith.cmpi eq, %arg2, %c0_i32 : i32
    %7 = arith.extui %6 : i1 to i32
    %c0_i32_11 = arith.constant 0 : i32
    %8 = arith.cmpi ne, %7, %c0_i32_11 : i32
    scf.if %8 {
      %cst_36 = arith.constant 0xFF800000 : f32
      %37 = vector.broadcast %cst_36 : f32 to vector<2x1x16xf32>
      %c0_37 = arith.constant 0 : index
      %c0_38 = arith.constant 0 : index
      %c0_39 = arith.constant 0 : index
      %38 = vector.load %arg7[%c0_37, %c0_38, %c0_39] : memref<2x1x16xf32, #tpu.memory_space<vmem>>, vector<2x1x16xf32>
      tpu.vector_store %arg7[%c0_37, %c0_38, %c0_39], %37 {strides = array<i32>} : memref<2x1x16xf32, #tpu.memory_space<vmem>>, vector<2x1x16xf32>,
      %cst_40 = arith.constant 0.000000e+00 : f32
      %39 = vector.broadcast %cst_40 : f32 to vector<2x1x16xf32>
      %c0_41 = arith.constant 0 : index
      %c0_42 = arith.constant 0 : index
      %c0_43 = arith.constant 0 : index
      %40 = vector.load %arg8[%c0_41, %c0_42, %c0_43] : memref<2x1x16xf32, #tpu.memory_space<vmem>>, vector<2x1x16xf32>
      tpu.vector_store %arg8[%c0_41, %c0_42, %c0_43], %39 {strides = array<i32>} : memref<2x1x16xf32, #tpu.memory_space<vmem>>, vector<2x1x16xf32>,
      %cst_44 = arith.constant 0.000000e+00 : f32
      %41 = vector.broadcast %cst_44 : f32 to vector<2x8x16xf32>
      %c0_45 = arith.constant 0 : index
      %c0_46 = arith.constant 0 : index
      %c0_47 = arith.constant 0 : index
      %42 = vector.load %arg9[%c0_45, %c0_46, %c0_47] : memref<2x8x16xf32, #tpu.memory_space<vmem>>, vector<2x8x16xf32>
      tpu.vector_store %arg9[%c0_45, %c0_46, %c0_47], %41 {strides = array<i32>} : memref<2x8x16xf32, #tpu.memory_space<vmem>>, vector<2x8x16xf32>,
    } else {
    }
    %cst = arith.constant 0.353553385 : f32
    %9 = vector.broadcast %cst : f32 to vector<2x8x16xf32>
    %10 = arith.mulf %1, %9 : vector<2x8x16xf32>
    %cst_12 = arith.constant dense<0.000000e+00> : vector<2x16x16xf32>
    %11 = tpu.matmul %3, %10, %cst_12 {dimension_numbers = #tpu.dot_dimension_numbers<[1], [1], [2], [2], [0, 0, 0, 2, 1, 2], [0], [0]>} : vector<2x8x16xf32>, vector<2x8x16xf32>, vector<2x16x16xf32> -> vector<2x16x16xf32>
    %c0_13 = arith.constant 0 : index
    %c0_14 = arith.constant 0 : index
    %c0_15 = arith.constant 0 : index
    %12 = vector.load %arg7[%c0_13, %c0_14, %c0_15] : memref<2x1x16xf32, #tpu.memory_space<vmem>>, vector<2x1x16xf32>
    %cst_16 = arith.constant dense<0xFF800000> : vector<2x16xf32>
    %13 = vector.multi_reduction <maximumf>, %11, %cst_16 [1] : vector<2x16x16xf32> to vector<2x16xf32>
    %14 = vector.shape_cast %13 : vector<2x16xf32> to vector<2x1x16xf32>
    %15 = arith.maximumf %12, %14 : vector<2x1x16xf32>
    %16 = arith.subf %12, %15 : vector<2x1x16xf32>
    %17 = math.exp %16 : vector<2x1x16xf32>
    %18 = vector.broadcast %15 : vector<2x1x16xf32> to vector<2x16x16xf32>
    %19 = arith.subf %11, %18 : vector<2x16x16xf32>
    %20 = math.exp %19 : vector<2x16x16xf32>
    %c0_17 = arith.constant 0 : index
    %c0_18 = arith.constant 0 : index
    %c0_19 = arith.constant 0 : index
    %21 = vector.load %arg8[%c0_17, %c0_18, %c0_19] : memref<2x1x16xf32, #tpu.memory_space<vmem>>, vector<2x1x16xf32>
    %22 = arith.mulf %17, %21 : vector<2x1x16xf32>
    %cst_20 = arith.constant dense<0.000000e+00> : vector<2x16xf32>
    %23 = vector.multi_reduction <add>, %20, %cst_20 [1] : vector<2x16x16xf32> to vector<2x16xf32>
    %24 = vector.shape_cast %23 : vector<2x16xf32> to vector<2x1x16xf32>
    %25 = arith.addf %22, %24 : vector<2x1x16xf32>
    %c0_21 = arith.constant 0 : index
    %c0_22 = arith.constant 0 : index
    %c0_23 = arith.constant 0 : index
    %26 = vector.load %arg8[%c0_21, %c0_22, %c0_23] : memref<2x1x16xf32, #tpu.memory_space<vmem>>, vector<2x1x16xf32>
    tpu.vector_store %arg8[%c0_21, %c0_22, %c0_23], %25 {strides = array<i32>} : memref<2x1x16xf32, #tpu.memory_space<vmem>>, vector<2x1x16xf32>,
    %cst_24 = arith.constant dense<0.000000e+00> : vector<2x8x16xf32>
    %27 = tpu.matmul %5, %20, %cst_24 {dimension_numbers = #tpu.dot_dimension_numbers<[2], [1], [1], [2], [0, 0, 0, 1, 1, 2], [0], [0]>} : vector<2x8x16xf32>, vector<2x16x16xf32>, vector<2x8x16xf32> -> vector<2x8x16xf32>
    %c0_25 = arith.constant 0 : index
    %c0_26 = arith.constant 0 : index
    %c0_27 = arith.constant 0 : index
    %28 = vector.load %arg9[%c0_25, %c0_26, %c0_27] : memref<2x8x16xf32, #tpu.memory_space<vmem>>, vector<2x8x16xf32>
    %29 = vector.broadcast %17 : vector<2x1x16xf32> to vector<2x8x16xf32>
    %30 = arith.mulf %29, %28 : vector<2x8x16xf32>
    %31 = arith.addf %30, %27 : vector<2x8x16xf32>
    %c0_28 = arith.constant 0 : index
    %c0_29 = arith.constant 0 : index
    %c0_30 = arith.constant 0 : index
    %32 = vector.load %arg9[%c0_28, %c0_29, %c0_30] : memref<2x8x16xf32, #tpu.memory_space<vmem>>, vector<2x8x16xf32>
    tpu.vector_store %arg9[%c0_28, %c0_29, %c0_30], %31 {strides = array<i32>} : memref<2x8x16xf32, #tpu.memory_space<vmem>>, vector<2x8x16xf32>,
    %c0_31 = arith.constant 0 : index
    %c0_32 = arith.constant 0 : index
    %c0_33 = arith.constant 0 : index
    %33 = vector.load %arg7[%c0_31, %c0_32, %c0_33] : memref<2x1x16xf32, #tpu.memory_space<vmem>>, vector<2x1x16xf32>
    tpu.vector_store %arg7[%c0_31, %c0_32, %c0_33], %15 {strides = array<i32>} : memref<2x1x16xf32, #tpu.memory_space<vmem>>, vector<2x1x16xf32>,
    %c0_i32_34 = arith.constant 0 : i32
    %34 = arith.cmpi eq, %arg2, %c0_i32_34 : i32
    %35 = arith.extui %34 : i1 to i32
    %c0_i32_35 = arith.constant 0 : i32
    %36 = arith.cmpi ne, %35, %c0_i32_35 : i32
    scf.if %36 {
      %c0_36 = arith.constant 0 : index
      %c0_37 = arith.constant 0 : index
      %c0_38 = arith.constant 0 : index
      %37 = vector.load %arg9[%c0_36, %c0_37, %c0_38] : memref<2x8x16xf32, #tpu.memory_space<vmem>>, vector<2x8x16xf32>
      %c0_39 = arith.constant 0 : index
      %c0_40 = arith.constant 0 : index
      %c0_41 = arith.constant 0 : index
      %38 = vector.load %arg8[%c0_39, %c0_40, %c0_41] : memref<2x1x16xf32, #tpu.memory_space<vmem>>, vector<2x1x16xf32>
      %39 = tpu.reciprocal %38 {approx = true} : vector<2x1x16xf32> -> vector<2x1x16xf32>
      %40 = vector.broadcast %39 : vector<2x1x16xf32> to vector<2x8x16xf32>
      %41 = arith.mulf %37, %40 : vector<2x8x16xf32>
      %c0_42 = arith.constant 0 : index
      %c0_43 = arith.constant 0 : index
      %c0_44 = arith.constant 0 : index
      %42 = vector.load %arg6[%c0_42, %c0_43, %c0_44] : memref<2x8x16xf32, #tpu.memory_space<vmem>>, vector<2x8x16xf32>
      tpu.vector_store %arg6[%c0_42, %c0_43, %c0_44], %41 {strides = array<i32>} : memref<2x8x16xf32, #tpu.memory_space<vmem>>, vector<2x8x16xf32>,
    } else {
    }
    return
  }
  func.func @transform_0(%arg0: i32, %arg1: i32, %arg2: i32) -> (i32, i32, i32, i32) {
    %c0_i32 = arith.constant 0 : i32
    %c0_i32_0 = arith.constant 0 : i32
    %c0_i32_1 = arith.constant 0 : i32
    return %arg0, %c0_i32, %c0_i32_0, %arg1 : i32, i32, i32, i32
  }
  func.func @transform_1(%arg0: i32, %arg1: i32, %arg2: i32) -> (i32, i32, i32, i32) {
    %c1_i32 = arith.constant 1 : i32
    %c0_i32 = arith.constant 0 : i32
    %c0_i32_0 = arith.constant 0 : i32
    return %arg0, %c1_i32, %c0_i32, %arg2 : i32, i32, i32, i32
  }
  func.func @transform_2(%arg0: i32, %arg1: i32, %arg2: i32) -> (i32, i32, i32, i32) {
    %c2_i32 = arith.constant 2 : i32
    %c0_i32 = arith.constant 0 : i32
    %c0_i32_0 = arith.constant 0 : i32
    return %arg0, %c2_i32, %c0_i32, %arg2 : i32, i32, i32, i32
  }
  func.func @transform_3(%arg0: i32, %arg1: i32, %arg2: i32) -> (i32, i32, i32) {
    %c0_i32 = arith.constant 0 : i32
    %c0_i32_0 = arith.constant 0 : i32
    return %arg0, %c0_i32, %arg1 : i32, i32, i32
  }
}

</mosaic_0001>

<llo_original>
// kernel: tpu_custom_call.1
$region0: #{tpu_custom_call.1}
  #allocation0 [shape = 'u32[]', space=smem, size = 0x4, offset = 0x4, fixed_abs, tag = 'smem constant byte address 0x4 - core index']
  #allocation1 [shape = 'u32[144,128]{1,0:T(1,128)}', space=vmem, size = 0x12000, scoped, tag = 'internal scratch']
  #allocation2 [shape = 'f32[2,1,16]{2,1,0:T(1,128)}', space=vmem, size = 0x400, scoped, tag = 'scratch operand']
  #allocation3 [shape = 'f32[2,1,16]{2,1,0:T(1,128)}', space=vmem, size = 0x400, scoped, tag = 'scratch operand']
  #allocation4 [shape = 'f32[2,8,16]{2,1,0:T(8,128)}', space=vmem, size = 0x2000, scoped, tag = 'scratch operand']
  %s0 = inlined_call_operand.hbm [shape: f32[4,3,8,16], index: 0, kind: input, shape index: {}]
  %s1 = inlined_call_operand.hbm [shape: f32[4,3,8,16], index: 1, kind: input, shape index: {}]
  %s2 = inlined_call_operand.hbm [shape: f32[4,3,8,16], index: 2, kind: input, shape index: {}]
  %s3 = inlined_call_operand.hbm [shape: f32[4,8,16], index: 3, kind: output, shape index: {}]
  %s4 = sld [smem:[#allocation0]]
  $region65: #{tpu_custom_call.1} parent=0
    _
  %s6 = ssub.s32 1, %s4
  %s7 = scalar_select 0, %s6, %s4
  $region1: #{tpu_custom_call.1} parent=0
    #allocation5 [shape = 'u8[16384]{0}', space=vmem, size = 0x4000, scoped, tag = 'input window, operand 0']
    #allocation6 [shape = 's32[2]{0}', space=sflag, size = 0x8, scoped, tag = 'scoped memory for tpu_custom_call.1']
    #allocation7 [shape = 's32[2]{0}', space=sflag, size = 0x8, scoped, tag = 'scoped memory for tpu_custom_call.1']
    #allocation8 [shape = 'u8[16384]{0}', space=vmem, size = 0x4000, scoped, tag = 'input window, operand 1']
    #allocation9 [shape = 's32[2]{0}', space=sflag, size = 0x8, scoped, tag = 'scoped memory for tpu_custom_call.1']
    #allocation10 [shape = 'u8[16384]{0}', space=vmem, size = 0x4000, scoped, tag = 'input window, operand 2']
    #allocation11 [shape = 'u8[16384]{0}', space=vmem, size = 0x4000, scoped, tag = 'output window, operand 0']
    %8 = vsyncpa [#allocation6], 0
    %s9 = scalar_lea.sflag [#allocation6], 1
    %10 = vsyncpa %s9, 0
    %11 = vsyncpa [#allocation9], 0
    %s12 = scalar_lea.sflag [#allocation9], 1
    %13 = vsyncpa %s12, 0
    %14 = vsyncpa [#allocation7], 0
    %s15 = scalar_lea.sflag [#allocation7], 1
    %16 = vsyncpa %s15, 0
    loop: start=0, step=1, limit=4
    $region2: #{tpu_custom_call.1} parent=1 // loop_pre_header
      _
    $region3: #{tpu_custom_call.1} parent=1 // loop_header
      %s18 = sphi 0, %s22
      %p19 = scmp.ge.s32.totalorder %s18, 4
      %s25 = sphi 0, %s44
      %s26 = sphi 0, %s40
      %s27 = sphi 0, %s36
      %s28 = sphi 0, %s25
      %s29 = sphi 0, %s26
      %s30 = sphi 0, %s27
      %s31 = sphi 0, %s28
      %s32 = sphi 0, %s29
      %s33 = sphi 0, %s30
      %s49 = sphi 0, %s51
      %s52 = sphi 0, %s49
      %s53 = sphi 0, %s52
      %s69 = sphi 0, %s53
      %s77 = sphi 0, %s79
      %s80 = sphi 0, %s77
      %s81 = sphi 0, %s80
      %s97 = sphi 0, %s81
      %s105 = sphi 0, %s107
      %s108 = sphi 0, %s105
      %s109 = sphi 0, %s108
      %s125 = sphi 0, %s109
      %s133 = sphi 0, %s135
      %s136 = sphi 0, %s133
      %s137 = sphi 0, %s136
      %s153 = sphi 0, %s137
    $region4: #{tpu_custom_call.1} parent=1 // loop_header_branch
      %21 = sbr.rel (%p19) target = $region8
    $region5: #{tpu_custom_call.1} parent=1 // loop_body
      %s23 = ssub.s32 %s18, 1
      %s24 = ssub.s32 %s18, 2
      %s34 = sadd.s32 1, %s27
      %p35 = scmp.ge.s32.totalorder %s34, 1
      %s36 = scalar_select %p35, 0, %s34
      %s37 = sadd.s32 1, %s26
      %s38 = scalar_select %p35, %s37, %s26
      %p39 = scmp.ge.s32.totalorder %s38, 1
      %s40 = scalar_select %p39, 0, %s38
      %s41 = sadd.s32 1, %s25
      %s42 = scalar_select %p39, %s41, %s25
      %p43 = scmp.ge.s32.totalorder %s42, 2
      %s44 = scalar_select %p43, 0, %s42
      %s45 = ssub.s32 %s25, %s44
      %s46 = ssub.s32 %s26, %s40
      %s47 = sor.u32 %s45, %s46
      %p48 = scmp.eq.s32.totalorder %s47, 0
      %s50 = sadd.s32 %s49, 1
      %s51 = scalar_select %p48, %s49, %s50
      %p54 = pneg %p48
      %p55 = scmp.eq.s32.totalorder %s18, 1
      %p56 = por %p54, %p55
      %p57 = scmp.ne.s32.totalorder %s49, %s52
      %p58 = scmp.eq.s32.totalorder %s18, 0
      %p59 = por %p57, %p58
      %p60 = scmp.ne.s32.totalorder %s49, %s52
      %p61 = scmp.eq.s32.totalorder %s23, 1
      %p62 = por %p60, %p61
      %p63 = scmp.ne.s32.totalorder %s52, %s53
      %p64 = scmp.eq.s32.totalorder %s23, 0
      %p65 = por %p63, %p64
      %p66 = scmp.ne.s32.totalorder %s52, %s53
      %p67 = scmp.eq.s32.totalorder %s24, 1
      %p68 = por %p66, %p67
      %p70 = scmp.ne.s32.totalorder %s53, %s69
      %p71 = scmp.eq.s32.totalorder %s24, 0
      %p72 = por %p70, %p71
      %s73 = ssub.s32 %s25, %s44
      %s74 = ssub.s32 %s27, %s36
      %s75 = sor.u32 %s73, %s74
      %p76 = scmp.eq.s32.totalorder %s75, 0
      %s78 = sadd.s32 %s77, 1
      %s79 = scalar_select %p76, %s77, %s78
      %p82 = pneg %p76
      %p83 = scmp.eq.s32.totalorder %s18, 1
      %p84 = por %p82, %p83
      %p85 = scmp.ne.s32.totalorder %s77, %s80
      %p86 = scmp.eq.s32.totalorder %s18, 0
      %p87 = por %p85, %p86
      %p88 = scmp.ne.s32.totalorder %s77, %s80
      %p89 = scmp.eq.s32.totalorder %s23, 1
      %p90 = por %p88, %p89
      %p91 = scmp.ne.s32.totalorder %s80, %s81
      %p92 = scmp.eq.s32.totalorder %s23, 0
      %p93 = por %p91, %p92
      %p94 = scmp.ne.s32.totalorder %s80, %s81
      %p95 = scmp.eq.s32.totalorder %s24, 1
      %p96 = por %p94, %p95
      %p98 = scmp.ne.s32.totalorder %s81, %s97
      %p99 = scmp.eq.s32.totalorder %s24, 0
      %p100 = por %p98, %p99
      %s101 = ssub.s32 %s25, %s44
      %s102 = ssub.s32 %s27, %s36
      %s103 = sor.u32 %s101, %s102
      %p104 = scmp.eq.s32.totalorder %s103, 0
      %s106 = sadd.s32 %s105, 1
      %s107 = scalar_select %p104, %s105, %s106
      %p110 = pneg %p104
      %p111 = scmp.eq.s32.totalorder %s18, 1
      %p112 = por %p110, %p111
      %p113 = scmp.ne.s32.totalorder %s105, %s108
      %p114 = scmp.eq.s32.totalorder %s18, 0
      %p115 = por %p113, %p114
      %p116 = scmp.ne.s32.totalorder %s105, %s108
      %p117 = scmp.eq.s32.totalorder %s23, 1
      %p118 = por %p116, %p117
      %p119 = scmp.ne.s32.totalorder %s108, %s109
      %p120 = scmp.eq.s32.totalorder %s23, 0
      %p121 = por %p119, %p120
      %p122 = scmp.ne.s32.totalorder %s108, %s109
      %p123 = scmp.eq.s32.totalorder %s24, 1
      %p124 = por %p122, %p123
      %p126 = scmp.ne.s32.totalorder %s109, %s125
      %p127 = scmp.eq.s32.totalorder %s24, 0
      %p128 = por %p126, %p127
      %s129 = ssub.s32 %s25, %s44
      %s130 = ssub.s32 %s26, %s40
      %s131 = sor.u32 %s129, %s130
      %p132 = scmp.eq.s32.totalorder %s131, 0
      %s134 = sadd.s32 %s133, 1
      %s135 = scalar_select %p132, %s133, %s134
      %p138 = pneg %p132
      %p139 = scmp.eq.s32.totalorder %s18, 1
      %p140 = por %p138, %p139
      %p141 = scmp.ne.s32.totalorder %s133, %s136
      %p142 = scmp.eq.s32.totalorder %s18, 0
      %p143 = por %p141, %p142
      %p144 = scmp.ne.s32.totalorder %s133, %s136
      %p145 = scmp.eq.s32.totalorder %s23, 1
      %p146 = por %p144, %p145
      %p147 = scmp.ne.s32.totalorder %s136, %s137
      %p148 = scmp.eq.s32.totalorder %s23, 0
      %p149 = por %p147, %p148
      %p150 = scmp.ne.s32.totalorder %s136, %s137
      %p151 = scmp.eq.s32.totalorder %s24, 1
      %p152 = por %p150, %p151
      %p154 = scmp.ne.s32.totalorder %s137, %s153
      %p155 = scmp.eq.s32.totalorder %s24, 0
      %p156 = por %p154, %p155
      %p157 = scmp.le.s32.totalorder 1, %s18
      %p158 = scmp.lt.s32.totalorder %s18, 3
      %p159 = pnand %p157, %p158
      %p160 = pneg %p159
      // Predicated region
      $region9: #{tpu_custom_call.1} parent=5 // pred_check
        _
      $region10: #{tpu_custom_call.1} parent=5 // pred_check_branch
        %162 = sbr.rel (%p159) target = $region12
      $region11: #{tpu_custom_call.1} parent=5 // pred_region
        %s163 = ssub.s32 %s18, 1
      $region12: #{tpu_custom_call.1} parent=5 // pred_fallthru
        _
      %p164 = scmp.lt.s32.totalorder %s18, 2
      // Predicated region
      $region13: #{tpu_custom_call.1} parent=5 // pred_check
        %p165 = pneg %p164
      $region14: #{tpu_custom_call.1} parent=5 // pred_check_branch
        %167 = sbr.rel (%p165) target = $region16
      $region15: #{tpu_custom_call.1} parent=5 // pred_region
        // Predicated region
        $region17: #{tpu_custom_call.1} parent=15 // pred_check
          %p168 = pneg %p59
        $region18: #{tpu_custom_call.1} parent=15 // pred_check_branch
          %170 = sbr.rel (%p168) target = $region20
        $region19: #{tpu_custom_call.1} parent=15 // pred_region
          %s171 = sand.u32 %s49, 1
          %s172 = scalar_lea.sflag [#allocation6], %s171
          %s173 = sand.u32 %s49, 1
          %s174 = smul.addr %s173, 16
          %s175 = scalar_lea.vmem [#allocation5], %s174
          %s176 = smul.u32 2, %s25
          %s178 = ssub.s32 256, 256
          %179 = vsyncadd %s172, %s178
          %s180 = smul.addr %s176, 3
          %s181 = sadd.s32 %s26, %s180
          %s182 = smul.addr %s181, 128
          %s183 = scalar_lea.hbm %s0, %s182
          %s184 = sshll.u32 %s175, 4
          %s185 = int_to_ptr.vmem [resolvable:$true] %s184
          %190 = dma.hbm_to_vmem [thread:$0]  %s183, 256, %s185, %s172, 384, 128, 8
        $region20: #{tpu_custom_call.1} parent=15 // pred_fallthru
          _
        // Predicated region
        $region21: #{tpu_custom_call.1} parent=15 // pred_check
          %p191 = pneg %p87
        $region22: #{tpu_custom_call.1} parent=15 // pred_check_branch
          %193 = sbr.rel (%p191) target = $region24
        $region23: #{tpu_custom_call.1} parent=15 // pred_region
          %s194 = sand.u32 %s18, 1
          %s195 = scalar_lea.sflag [#allocation9], %s194
          %s196 = sand.u32 %s77, 1
          %s197 = smul.addr %s196, 16
          %s198 = scalar_lea.vmem [#allocation8], %s197
          %s199 = smul.u32 2, %s25
          %s201 = ssub.s32 256, 256
          %202 = vsyncadd %s195, %s201
          %s203 = sadd.s32 %s27, 1
          %s204 = smul.addr %s199, 3
          %s205 = sadd.s32 %s203, %s204
          %s206 = smul.addr %s205, 128
          %s207 = scalar_lea.hbm %s1, %s206
          %s208 = sshll.u32 %s198, 4
          %s209 = int_to_ptr.vmem [resolvable:$true] %s208
          %214 = dma.hbm_to_vmem [thread:$0]  %s207, 256, %s209, %s195, 384, 128, 8
        $region24: #{tpu_custom_call.1} parent=15 // pred_fallthru
          _
        // Predicated region
        $region25: #{tpu_custom_call.1} parent=15 // pred_check
          %p215 = pneg %p115
        $region26: #{tpu_custom_call.1} parent=15 // pred_check_branch
          %217 = sbr.rel (%p215) target = $region28
        $region27: #{tpu_custom_call.1} parent=15 // pred_region
          %s218 = sand.u32 %s18, 1
          %s219 = scalar_lea.sflag [#allocation9], %s218
          %s220 = sand.u32 %s105, 1
          %s221 = smul.addr %s220, 16
          %s222 = scalar_lea.vmem [#allocation10], %s221
          %s223 = smul.u32 2, %s25
          %s225 = ssub.s32 256, 256
          %226 = vsyncadd %s219, %s225
          %s227 = sadd.s32 %s27, 2
          %s228 = smul.addr %s223, 3
          %s229 = sadd.s32 %s227, %s228
          %s230 = smul.addr %s229, 128
          %s231 = scalar_lea.hbm %s2, %s230
          %s232 = sshll.u32 %s222, 4
          %s233 = int_to_ptr.vmem [resolvable:$true] %s232
          %238 = dma.hbm_to_vmem [thread:$0]  %s231, 256, %s233, %s219, 384, 128, 8
        $region28: #{tpu_custom_call.1} parent=15 // pred_fallthru
          _
      $region16: #{tpu_custom_call.1} parent=5 // pred_fallthru
        _
      %p239 = scmp.le.s32.totalorder 1, %s18
      %p240 = scmp.lt.s32.totalorder %s18, 3
      %p241 = pnand %p239, %p240
      %p242 = pneg %p241
      // Predicated region
      $region29: #{tpu_custom_call.1} parent=5 // pred_check
        _
      $region30: #{tpu_custom_call.1} parent=5 // pred_check_branch
        %244 = sbr.rel (%p241) target = $region32
      $region31: #{tpu_custom_call.1} parent=5 // pred_region
        %s245 = ssub.s32 %s18, 1
        %s246 = sand.u32 %s52, 1
        %s247 = scalar_lea.sflag [#allocation6], %s246
        %s248 = sand.u32 %s52, 1
        %s249 = smul.addr %s248, 16
        %s250 = scalar_lea.vmem [#allocation5], %s249
        // Predicated region
        $region33: #{tpu_custom_call.1} parent=31 // pred_check
          %p251 = pneg %p65
        $region34: #{tpu_custom_call.1} parent=31 // pred_check_branch
          %253 = sbr.rel (%p251) target = $region36
        $region35: #{tpu_custom_call.1} parent=31 // pred_region
          %254 = dma.done %s247, 256
        $region36: #{tpu_custom_call.1} parent=31 // pred_fallthru
          _
        %s255 = sand.u32 %s23, 1
        %s256 = scalar_lea.sflag [#allocation9], %s255
        %s257 = sand.u32 %s80, 1
        %s258 = smul.addr %s257, 16
        %s259 = scalar_lea.vmem [#allocation8], %s258
        // Predicated region
        $region37: #{tpu_custom_call.1} parent=31 // pred_check
          %p260 = pneg %p93
        $region38: #{tpu_custom_call.1} parent=31 // pred_check_branch
          %262 = sbr.rel (%p260) target = $region40
        $region39: #{tpu_custom_call.1} parent=31 // pred_region
          %263 = dma.done %s256, 256
        $region40: #{tpu_custom_call.1} parent=31 // pred_fallthru
          _
        %s264 = sand.u32 %s23, 1
        %s265 = scalar_lea.sflag [#allocation9], %s264
        %s266 = sand.u32 %s108, 1
        %s267 = smul.addr %s266, 16
        %s268 = scalar_lea.vmem [#allocation10], %s267
        // Predicated region
        $region41: #{tpu_custom_call.1} parent=31 // pred_check
          %p269 = pneg %p121
        $region42: #{tpu_custom_call.1} parent=31 // pred_check_branch
          %271 = sbr.rel (%p269) target = $region44
        $region43: #{tpu_custom_call.1} parent=31 // pred_region
          %272 = dma.done %s265, 256
        $region44: #{tpu_custom_call.1} parent=31 // pred_fallthru
          _
        %s273 = sand.u32 %s52, 1
        %s274 = scalar_lea.sflag [#allocation6], %s273
        %s275 = sand.u32 %s52, 1
        %s276 = smul.addr %s275, 16
        %s277 = scalar_lea.vmem [#allocation5], %s276
        %p278 = pneg %p65
        %p279 = pneg %p62
        %s280 = sand.u32 %s23, 1
        %s281 = scalar_lea.sflag [#allocation9], %s280
        %s282 = sand.u32 %s80, 1
        %s283 = smul.addr %s282, 16
        %s284 = scalar_lea.vmem [#allocation8], %s283
        %p285 = pneg %p93
        %p286 = pneg %p90
        %s287 = sand.u32 %s23, 1
        %s288 = scalar_lea.sflag [#allocation9], %s287
        %s289 = sand.u32 %s108, 1
        %s290 = smul.addr %s289, 16
        %s291 = scalar_lea.vmem [#allocation10], %s290
        %p292 = pneg %p121
        %p293 = pneg %p118
        %p294 = pneg %p149
        %p295 = pneg %p146
        %s296 = sand.u32 %s136, 1
        %s297 = scalar_lea.sflag [#allocation7], %s296
        %s298 = sand.u32 %s136, 1
        %s299 = smul.addr %s298, 16
        %s300 = scalar_lea.vmem [#allocation11], %s299
        %s301 = smul.u32 2, %s28
        %s302 = smul.u32 2, %s28
        %s303 = smul.u32 2, %s28
        %s304 = smul.u32 2, %s28
        %v305 = vld [vmem:[%s250] sm:$0xff]
        %v306 = vld [vmem:[%s250 + $0x8] sm:$0xff]
        %v307 = vld [vmem:[%s259] sm:$0xff]
        %v308 = vld [vmem:[%s259 + $0x8] sm:$0xff]
        %v309 = vld [vmem:[%s268] sm:$0xff]
        %v310 = vld [vmem:[%s268 + $0x8] sm:$0xff]
        %p311 = scmp.eq.s32.totalorder %s30, 0
        // Predicated region
        $region45: #{tpu_custom_call.1} parent=31 // pred_check
          %p312 = pneg %p311
        $region46: #{tpu_custom_call.1} parent=31 // pred_check_branch
          %314 = sbr.rel (%p312) target = $region48
        $region47: #{tpu_custom_call.1} parent=31 // pred_region
          %vm315 = vcmask 122880
          %316 = vst.msk [vmem:[#allocation2] sm:$0x1] %vm315, -inf
          %317 = vst.msk [vmem:[#allocation2 + $0x1] sm:$0x1] %vm315, -inf
          %318 = vst.msk [vmem:[#allocation3] sm:$0x1] %vm315, 0.0
          %319 = vst.msk [vmem:[#allocation3 + $0x1] sm:$0x1] %vm315, 0.0
          %vm320 = vcmask 130048
          %321 = vst.msk [vmem:[#allocation4] sm:$0xff] %vm320, 0.0
          %322 = vst.msk [vmem:[#allocation4 + $0x8] sm:$0xff] %vm320, 0.0
        $region48: #{tpu_custom_call.1} parent=31 // pred_fallthru
          _
        %v323 = vmul.f32 %v305, 0.35355338
        %v324 = vmul.f32 %v306, 0.35355338
        %325 = vxpose.xlu0.b32.start [1/16] %v307, 128
        %326 = vxpose.xlu0.b32.cont [2/16] 0.0, 128
        %327 = vxpose.xlu0.b32.cont [3/16] 0.0, 128
        %328 = vxpose.xlu0.b32.cont [4/16] 0.0, 128
        %329 = vxpose.xlu0.b32.cont [5/16] 0.0, 128
        %330 = vxpose.xlu0.b32.cont [6/16] 0.0, 128
        %331 = vxpose.xlu0.b32.cont [7/16] 0.0, 128
        %332 = vxpose.xlu0.b32.cont [8/16] 0.0, 128
        %333 = vxpose.xlu0.b32.cont [9/16] 0.0, 128
        %334 = vxpose.xlu0.b32.cont [10/16] 0.0, 128
        %335 = vxpose.xlu0.b32.cont [11/16] 0.0, 128
        %336 = vxpose.xlu0.b32.cont [12/16] 0.0, 128
        %337 = vxpose.xlu0.b32.cont [13/16] 0.0, 128
        %338 = vxpose.xlu0.b32.cont [14/16] 0.0, 128
        %339 = vxpose.xlu0.b32.cont [15/16] 0.0, 128
        %340 = vxpose.xlu0.b32.end [16/16] 0.0, 128
        %v341 = vpop.trf.xlu0
        %v342 = vpop.trf.xlu0
        %v343 = vpop.trf.xlu0
        %v344 = vpop.trf.xlu0
        %v345 = vpop.trf.xlu0
        %v346 = vpop.trf.xlu0
        %v347 = vpop.trf.xlu0
        %v348 = vpop.trf.xlu0
        %v349 = vpop.trf.xlu0
        %v350 = vpop.trf.xlu0
        %v351 = vpop.trf.xlu0
        %v352 = vpop.trf.xlu0
        %v353 = vpop.trf.xlu0
        %v354 = vpop.trf.xlu0
        %v355 = vpop.trf.xlu0
        %v356 = vpop.trf.xlu0
        %vm357 = vcmask 64512
        %v359 = vsel %vm357, %v341, 0
        %v362 = vsel %vm357, %v342, 0
        %364 = vmatprep.subr.mxu0 0.0
        %365 = vmatpush1.msra.mxu0 %v323
        %366 = vmatprep.subr.mxu0 0.0
        %367 = vmatpush1.msra.mxu0 0.0
        %368 = vmatprep.subr.mxu0 0.0
        %369 = vmatpush1.msra.mxu0 0.0
        %370 = vmatprep.subr.mxu0 0.0
        %371 = vmatpush1.msra.mxu0 0.0
        %372 = vmatprep.subr.mxu0 0.0
        %373 = vmatpush1.msra.mxu0 0.0
        %374 = vmatprep.subr.mxu0 0.0
        %375 = vmatpush1.msra.mxu0 0.0
        %376 = vmatprep.subr.mxu0 0.0
        %377 = vmatpush1.msra.mxu0 0.0
        %378 = vmatprep.subr.mxu0 0.0
        %379 = vmatpush1.msra.mxu0 0.0
        %380 = vmatprep.subr.mxu0 0.0
        %381 = vmatpush1.msra.mxu0 0.0
        %382 = vmatprep.subr.mxu0 0.0
        %383 = vmatpush1.msra.mxu0 0.0
        %384 = vmatprep.subr.mxu0 0.0
        %385 = vmatpush1.msra.mxu0 0.0
        %386 = vmatprep.subr.mxu0 0.0
        %387 = vmatpush1.msra.mxu0 0.0
        %388 = vmatprep.subr.mxu0 0.0
        %389 = vmatpush1.msra.mxu0 0.0
        %390 = vmatprep.subr.mxu0 0.0
        %391 = vmatpush1.msra.mxu0 0.0
        %392 = vmatprep.subr.mxu0 0.0
        %393 = vmatpush1.msra.mxu0 0.0
        %394 = vmatprep.subr.mxu0 0.0
        %395 = vmatpush1.msra.mxu0 0.0
        %396 = vmatprep.subr.mxu0 0.0
        %397 = vmatpush1.msra.mxu0 0.0
        %398 = vmatprep.subr.mxu0 0.0
        %399 = vmatpush1.msra.mxu0 0.0
        %400 = vmatprep.subr.mxu0 0.0
        %401 = vmatpush1.msra.mxu0 0.0
        %402 = vmatprep.subr.mxu0 0.0
        %403 = vmatpush1.msra.mxu0 0.0
        %404 = vmatprep.subr.mxu0 0.0
        %405 = vmatpush1.msra.mxu0 0.0
        %406 = vmatprep.subr.mxu0 0.0
        %407 = vmatpush1.msra.mxu0 0.0
        %408 = vmatprep.subr.mxu0 0.0
        %409 = vmatpush1.msra.mxu0 0.0
        %410 = vmatprep.subr.mxu0 0.0
        %411 = vmatpush1.msra.mxu0 0.0
        %412 = vmatprep.subr.mxu0 0.0
        %413 = vmatpush1.msra.mxu0 0.0
        %414 = vmatprep.subr.mxu0 0.0
        %415 = vmatpush1.msra.mxu0 0.0
        %416 = vmatprep.subr.mxu0 0.0
        %417 = vmatpush1.msra.mxu0 0.0
        %418 = vmatprep.subr.mxu0 0.0
        %419 = vmatpush1.msra.mxu0 0.0
        %420 = vmatprep.subr.mxu0 0.0
        %421 = vmatpush1.msra.mxu0 0.0
        %422 = vmatprep.subr.mxu0 0.0
        %423 = vmatpush1.msra.mxu0 0.0
        %424 = vmatprep.subr.mxu0 0.0
        %425 = vmatpush1.msra.mxu0 0.0
        %426 = vmatprep.subr.mxu0 0.0
        %427 = vmatpush1.msra.mxu0 0.0
        %428 = vmatprep.mubr.f32.mxu0 0.0
        %429 = vmatmul.mubr.f32.gmra.mrb[0].mxu0 %v359
        %v430 = vpop.f32.mrb[0].mxu0
        %v431 = vadd.f32 0.0, %v430
        %v432 = vpop.f32.mrb[0].mxu0
        %433 = vmatprep.mubr.f32.mxu0 0.0
        %434 = vmatmul.mubr.f32.gmra.mrb[0].mxu0 %v362
        %v435 = vpop.f32.mrb[0].mxu0
        %v436 = vadd.f32 0.0, %v435
        %v437 = vpop.f32.mrb[0].mxu0
        %438 = vdwg.mxu0
        %439 = vxpose.xlu0.b32.start [1/16] %v308, 128
        %440 = vxpose.xlu0.b32.cont [2/16] 0.0, 128
        %441 = vxpose.xlu0.b32.cont [3/16] 0.0, 128
        %442 = vxpose.xlu0.b32.cont [4/16] 0.0, 128
        %443 = vxpose.xlu0.b32.cont [5/16] 0.0, 128
        %444 = vxpose.xlu0.b32.cont [6/16] 0.0, 128
        %445 = vxpose.xlu0.b32.cont [7/16] 0.0, 128
        %446 = vxpose.xlu0.b32.cont [8/16] 0.0, 128
        %447 = vxpose.xlu0.b32.cont [9/16] 0.0, 128
        %448 = vxpose.xlu0.b32.cont [10/16] 0.0, 128
        %449 = vxpose.xlu0.b32.cont [11/16] 0.0, 128
        %450 = vxpose.xlu0.b32.cont [12/16] 0.0, 128
        %451 = vxpose.xlu0.b32.cont [13/16] 0.0, 128
        %452 = vxpose.xlu0.b32.cont [14/16] 0.0, 128
        %453 = vxpose.xlu0.b32.cont [15/16] 0.0, 128
        %454 = vxpose.xlu0.b32.end [16/16] 0.0, 128
        %v455 = vpop.trf.xlu0
        %v456 = vpop.trf.xlu0
        %v457 = vpop.trf.xlu0
        %v458 = vpop.trf.xlu0
        %v459 = vpop.trf.xlu0
        %v460 = vpop.trf.xlu0
        %v461 = vpop.trf.xlu0
        %v462 = vpop.trf.xlu0
        %v463 = vpop.trf.xlu0
        %v464 = vpop.trf.xlu0
        %v465 = vpop.trf.xlu0
        %v466 = vpop.trf.xlu0
        %v467 = vpop.trf.xlu0
        %v468 = vpop.trf.xlu0
        %v469 = vpop.trf.xlu0
        %v470 = vpop.trf.xlu0
        %v472 = vsel %vm357, %v455, 0
        %v475 = vsel %vm357, %v456, 0
        %477 = vmatprep.subr.mxu0 0.0
        %478 = vmatpush1.msra.mxu0 %v324
        %479 = vmatprep.subr.mxu0 0.0
        %480 = vmatpush1.msra.mxu0 0.0
        %481 = vmatprep.subr.mxu0 0.0
        %482 = vmatpush1.msra.mxu0 0.0
        %483 = vmatprep.subr.mxu0 0.0
        %484 = vmatpush1.msra.mxu0 0.0
        %485 = vmatprep.subr.mxu0 0.0
        %486 = vmatpush1.msra.mxu0 0.0
        %487 = vmatprep.subr.mxu0 0.0
        %488 = vmatpush1.msra.mxu0 0.0
        %489 = vmatprep.subr.mxu0 0.0
        %490 = vmatpush1.msra.mxu0 0.0
        %491 = vmatprep.subr.mxu0 0.0
        %492 = vmatpush1.msra.mxu0 0.0
        %493 = vmatprep.subr.mxu0 0.0
        %494 = vmatpush1.msra.mxu0 0.0
        %495 = vmatprep.subr.mxu0 0.0
        %496 = vmatpush1.msra.mxu0 0.0
        %497 = vmatprep.subr.mxu0 0.0
        %498 = vmatpush1.msra.mxu0 0.0
        %499 = vmatprep.subr.mxu0 0.0
        %500 = vmatpush1.msra.mxu0 0.0
        %501 = vmatprep.subr.mxu0 0.0
        %502 = vmatpush1.msra.mxu0 0.0
        %503 = vmatprep.subr.mxu0 0.0
        %504 = vmatpush1.msra.mxu0 0.0
        %505 = vmatprep.subr.mxu0 0.0
        %506 = vmatpush1.msra.mxu0 0.0
        %507 = vmatprep.subr.mxu0 0.0
        %508 = vmatpush1.msra.mxu0 0.0
        %509 = vmatprep.subr.mxu0 0.0
        %510 = vmatpush1.msra.mxu0 0.0
        %511 = vmatprep.subr.mxu0 0.0
        %512 = vmatpush1.msra.mxu0 0.0
        %513 = vmatprep.subr.mxu0 0.0
        %514 = vmatpush1.msra.mxu0 0.0
        %515 = vmatprep.subr.mxu0 0.0
        %516 = vmatpush1.msra.mxu0 0.0
        %517 = vmatprep.subr.mxu0 0.0
        %518 = vmatpush1.msra.mxu0 0.0
        %519 = vmatprep.subr.mxu0 0.0
        %520 = vmatpush1.msra.mxu0 0.0
        %521 = vmatprep.subr.mxu0 0.0
        %522 = vmatpush1.msra.mxu0 0.0
        %523 = vmatprep.subr.mxu0 0.0
        %524 = vmatpush1.msra.mxu0 0.0
        %525 = vmatprep.subr.mxu0 0.0
        %526 = vmatpush1.msra.mxu0 0.0
        %527 = vmatprep.subr.mxu0 0.0
        %528 = vmatpush1.msra.mxu0 0.0
        %529 = vmatprep.subr.mxu0 0.0
        %530 = vmatpush1.msra.mxu0 0.0
        %531 = vmatprep.subr.mxu0 0.0
        %532 = vmatpush1.msra.mxu0 0.0
        %533 = vmatprep.subr.mxu0 0.0
        %534 = vmatpush1.msra.mxu0 0.0
        %535 = vmatprep.subr.mxu0 0.0
        %536 = vmatpush1.msra.mxu0 0.0
        %537 = vmatprep.subr.mxu0 0.0
        %538 = vmatpush1.msra.mxu0 0.0
        %539 = vmatprep.subr.mxu0 0.0
        %540 = vmatpush1.msra.mxu0 0.0
        %541 = vmatprep.mubr.f32.mxu0 0.0
        %542 = vmatmul.mubr.f32.gmra.mrb[0].mxu0 %v472
        %v543 = vpop.f32.mrb[0].mxu0
        %v544 = vadd.f32 0.0, %v543
        %v545 = vpop.f32.mrb[0].mxu0
        %546 = vmatprep.mubr.f32.mxu0 0.0
        %547 = vmatmul.mubr.f32.gmra.mrb[0].mxu0 %v475
        %v548 = vpop.f32.mrb[0].mxu0
        %v549 = vadd.f32 0.0, %v548
        %v550 = vpop.f32.mrb[0].mxu0
        %551 = vdwg.mxu0
        %v552 = vld [vmem:[#allocation2] sm:$0x1]
        %v553 = vld [vmem:[#allocation2 + $0x1] sm:$0x1]
        %vm554 = vcmask 130048
        %v555 = vsel %vm554, %v431, -inf
        %v556 = vsel %vm554, %v436, -inf
        %v557 = vmax.f32 %v555, %v556
        %v558 = vrot.slane %v557, 4
        %v559 = vmax.f32 %v557, %v558
        %v560 = vrot.slane %v559, 2
        %v561 = vmax.f32 %v559, %v560
        %v562 = vrot.slane %v561, 1
        %v563 = vmax.f32 %v561, %v562
        %v564 = vsel %vm554, %v544, -inf
        %v565 = vsel %vm554, %v549, -inf
        %v566 = vmax.f32 %v564, %v565
        %v567 = vrot.slane %v566, 4
        %v568 = vmax.f32 %v566, %v567
        %v569 = vrot.slane %v568, 2
        %v570 = vmax.f32 %v568, %v569
        %v571 = vrot.slane %v570, 1
        %v572 = vmax.f32 %v570, %v571
        %v573 = vmax.f32 %v552, %v563
        %v574 = vmax.f32 %v553, %v572
        %v575 = vsub.f32 %v552, %v573
        %v576 = vsub.f32 %v553, %v574
        %v577 = vmul.f32 %v575, 1.442695
        %v578 = vpow.pop %v577
        %v579 = vmul.f32 %v576, 1.442695
        %v580 = vpow.pop %v579
        %v583 = vlaneseq
        %v584 = vshrl.u32 %v583, 7
        %v585 = vsub.s32 0, %v584
        %v586 = vrot.slane %v573, %v585
        %v587 = vlaneseq
        %v588 = vshrl.u32 %v587, 7
        %v589 = vsub.s32 0, %v588
        %v590 = vrot.slane %v574, %v589
        %v593 = vsub.f32 %v431, %v586
        %v594 = vsub.f32 %v436, %v586
        %v595 = vsub.f32 %v544, %v590
        %v596 = vsub.f32 %v549, %v590
        %v597 = vmul.f32 %v593, 1.442695
        %v598 = vpow.pop %v597
        %v599 = vmul.f32 %v594, 1.442695
        %v600 = vpow.pop %v599
        %v601 = vmul.f32 %v595, 1.442695
        %v602 = vpow.pop %v601
        %v603 = vmul.f32 %v596, 1.442695
        %v604 = vpow.pop %v603
        %v605 = vld [vmem:[#allocation3] sm:$0x1]
        %v606 = vld [vmem:[#allocation3 + $0x1] sm:$0x1]
        %v607 = vmul.f32 %v578, %v605
        %v608 = vmul.f32 %v580, %v606
        %v609 = vsel %vm554, %v598, 0.0
        %v610 = vsel %vm554, %v600, 0.0
        %v611 = vadd.f32 %v609, %v610
        %v612 = vrot.slane %v611, 4
        %v613 = vadd.f32 %v611, %v612
        %v614 = vrot.slane %v613, 2
        %v615 = vadd.f32 %v613, %v614
        %v616 = vrot.slane %v615, 1
        %v617 = vadd.f32 %v615, %v616
        %v618 = vsel %vm554, %v602, 0.0
        %v619 = vsel %vm554, %v604, 0.0
        %v620 = vadd.f32 %v618, %v619
        %v621 = vrot.slane %v620, 4
        %v622 = vadd.f32 %v620, %v621
        %v623 = vrot.slane %v622, 2
        %v624 = vadd.f32 %v622, %v623
        %v625 = vrot.slane %v624, 1
        %v626 = vadd.f32 %v624, %v625
        %v627 = vadd.f32 %v607, %v617
        %v628 = vadd.f32 %v608, %v626
        %vm629 = vcmask 122880
        %630 = vst.msk [vmem:[#allocation3] sm:$0x1] %vm629, %v627
        %631 = vst.msk [vmem:[#allocation3 + $0x1] sm:$0x1] %vm629, %v628
        %v633 = vsel %vm554, %v309, 0
        %635 = vmatprep.subr.mxu0 0.0
        %636 = vmatpush1.msra.mxu0 %v598
        %637 = vmatprep.subr.mxu0 0.0
        %638 = vmatpush1.msra.mxu0 %v600
        %639 = vmatprep.subr.mxu0 0.0
        %640 = vmatpush1.msra.mxu0 0.0
        %641 = vmatprep.subr.mxu0 0.0
        %642 = vmatpush1.msra.mxu0 0.0
        %643 = vmatprep.subr.mxu0 0.0
        %644 = vmatpush1.msra.mxu0 0.0
        %645 = vmatprep.subr.mxu0 0.0
        %646 = vmatpush1.msra.mxu0 0.0
        %647 = vmatprep.subr.mxu0 0.0
        %648 = vmatpush1.msra.mxu0 0.0
        %649 = vmatprep.subr.mxu0 0.0
        %650 = vmatpush1.msra.mxu0 0.0
        %651 = vmatprep.subr.mxu0 0.0
        %652 = vmatpush1.msra.mxu0 0.0
        %653 = vmatprep.subr.mxu0 0.0
        %654 = vmatpush1.msra.mxu0 0.0
        %655 = vmatprep.subr.mxu0 0.0
        %656 = vmatpush1.msra.mxu0 0.0
        %657 = vmatprep.subr.mxu0 0.0
        %658 = vmatpush1.msra.mxu0 0.0
        %659 = vmatprep.subr.mxu0 0.0
        %660 = vmatpush1.msra.mxu0 0.0
        %661 = vmatprep.subr.mxu0 0.0
        %662 = vmatpush1.msra.mxu0 0.0
        %663 = vmatprep.subr.mxu0 0.0
        %664 = vmatpush1.msra.mxu0 0.0
        %665 = vmatprep.subr.mxu0 0.0
        %666 = vmatpush1.msra.mxu0 0.0
        %667 = vmatprep.subr.mxu0 0.0
        %668 = vmatpush1.msra.mxu0 0.0
        %669 = vmatprep.subr.mxu0 0.0
        %670 = vmatpush1.msra.mxu0 0.0
        %671 = vmatprep.subr.mxu0 0.0
        %672 = vmatpush1.msra.mxu0 0.0
        %673 = vmatprep.subr.mxu0 0.0
        %674 = vmatpush1.msra.mxu0 0.0
        %675 = vmatprep.subr.mxu0 0.0
        %676 = vmatpush1.msra.mxu0 0.0
        %677 = vmatprep.subr.mxu0 0.0
        %678 = vmatpush1.msra.mxu0 0.0
        %679 = vmatprep.subr.mxu0 0.0
        %680 = vmatpush1.msra.mxu0 0.0
        %681 = vmatprep.subr.mxu0 0.0
        %682 = vmatpush1.msra.mxu0 0.0
        %683 = vmatprep.subr.mxu0 0.0
        %684 = vmatpush1.msra.mxu0 0.0
        %685 = vmatprep.subr.mxu0 0.0
        %686 = vmatpush1.msra.mxu0 0.0
        %687 = vmatprep.subr.mxu0 0.0
        %688 = vmatpush1.msra.mxu0 0.0
        %689 = vmatprep.subr.mxu0 0.0
        %690 = vmatpush1.msra.mxu0 0.0
        %691 = vmatprep.subr.mxu0 0.0
        %692 = vmatpush1.msra.mxu0 0.0
        %693 = vmatprep.subr.mxu0 0.0
        %694 = vmatpush1.msra.mxu0 0.0
        %695 = vmatprep.subr.mxu0 0.0
        %696 = vmatpush1.msra.mxu0 0.0
        %697 = vmatprep.subr.mxu0 0.0
        %698 = vmatpush1.msra.mxu0 0.0
        %699 = vmatprep.mubr.f32.mxu0 0.0
        %700 = vmatmul.mubr.f32.gmra.mrb[0].mxu0 %v633
        %v701 = vpop.f32.mrb[0].mxu0
        %v702 = vadd.f32 0.0, %v701
        %v703 = vpop.f32.mrb[0].mxu0
        %704 = vdwg.mxu0
        %v706 = vsel %vm554, %v310, 0
        %708 = vmatprep.subr.mxu0 0.0
        %709 = vmatpush1.msra.mxu0 %v602
        %710 = vmatprep.subr.mxu0 0.0
        %711 = vmatpush1.msra.mxu0 %v604
        %712 = vmatprep.subr.mxu0 0.0
        %713 = vmatpush1.msra.mxu0 0.0
        %714 = vmatprep.subr.mxu0 0.0
        %715 = vmatpush1.msra.mxu0 0.0
        %716 = vmatprep.subr.mxu0 0.0
        %717 = vmatpush1.msra.mxu0 0.0
        %718 = vmatprep.subr.mxu0 0.0
        %719 = vmatpush1.msra.mxu0 0.0
        %720 = vmatprep.subr.mxu0 0.0
        %721 = vmatpush1.msra.mxu0 0.0
        %722 = vmatprep.subr.mxu0 0.0
        %723 = vmatpush1.msra.mxu0 0.0
        %724 = vmatprep.subr.mxu0 0.0
        %725 = vmatpush1.msra.mxu0 0.0
        %726 = vmatprep.subr.mxu0 0.0
        %727 = vmatpush1.msra.mxu0 0.0
        %728 = vmatprep.subr.mxu0 0.0
        %729 = vmatpush1.msra.mxu0 0.0
        %730 = vmatprep.subr.mxu0 0.0
        %731 = vmatpush1.msra.mxu0 0.0
        %732 = vmatprep.subr.mxu0 0.0
        %733 = vmatpush1.msra.mxu0 0.0
        %734 = vmatprep.subr.mxu0 0.0
        %735 = vmatpush1.msra.mxu0 0.0
        %736 = vmatprep.subr.mxu0 0.0
        %737 = vmatpush1.msra.mxu0 0.0
        %738 = vmatprep.subr.mxu0 0.0
        %739 = vmatpush1.msra.mxu0 0.0
        %740 = vmatprep.subr.mxu0 0.0
        %741 = vmatpush1.msra.mxu0 0.0
        %742 = vmatprep.subr.mxu0 0.0
        %743 = vmatpush1.msra.mxu0 0.0
        %744 = vmatprep.subr.mxu0 0.0
        %745 = vmatpush1.msra.mxu0 0.0
        %746 = vmatprep.subr.mxu0 0.0
        %747 = vmatpush1.msra.mxu0 0.0
        %748 = vmatprep.subr.mxu0 0.0
        %749 = vmatpush1.msra.mxu0 0.0
        %750 = vmatprep.subr.mxu0 0.0
        %751 = vmatpush1.msra.mxu0 0.0
        %752 = vmatprep.subr.mxu0 0.0
        %753 = vmatpush1.msra.mxu0 0.0
        %754 = vmatprep.subr.mxu0 0.0
        %755 = vmatpush1.msra.mxu0 0.0
        %756 = vmatprep.subr.mxu0 0.0
        %757 = vmatpush1.msra.mxu0 0.0
        %758 = vmatprep.subr.mxu0 0.0
        %759 = vmatpush1.msra.mxu0 0.0
        %760 = vmatprep.subr.mxu0 0.0
        %761 = vmatpush1.msra.mxu0 0.0
        %762 = vmatprep.subr.mxu0 0.0
        %763 = vmatpush1.msra.mxu0 0.0
        %764 = vmatprep.subr.mxu0 0.0
        %765 = vmatpush1.msra.mxu0 0.0
        %766 = vmatprep.subr.mxu0 0.0
        %767 = vmatpush1.msra.mxu0 0.0
        %768 = vmatprep.subr.mxu0 0.0
        %769 = vmatpush1.msra.mxu0 0.0
        %770 = vmatprep.subr.mxu0 0.0
        %771 = vmatpush1.msra.mxu0 0.0
        %772 = vmatprep.mubr.f32.mxu0 0.0
        %773 = vmatmul.mubr.f32.gmra.mrb[0].mxu0 %v706
        %v774 = vpop.f32.mrb[0].mxu0
        %v775 = vadd.f32 0.0, %v774
        %v776 = vpop.f32.mrb[0].mxu0
        %777 = vdwg.mxu0
        %v778 = vld [vmem:[#allocation4] sm:$0xff]
        %v779 = vld [vmem:[#allocation4 + $0x8] sm:$0xff]
        %v782 = vlaneseq
        %v783 = vshrl.u32 %v782, 7
        %v784 = vsub.s32 0, %v783
        %v785 = vrot.slane %v578, %v784
        %v786 = vlaneseq
        %v787 = vshrl.u32 %v786, 7
        %v788 = vsub.s32 0, %v787
        %v789 = vrot.slane %v580, %v788
        %v792 = vmul.f32 %v785, %v778
        %v793 = vmul.f32 %v789, %v779
        %v794 = vadd.f32 %v792, %v702
        %v795 = vadd.f32 %v793, %v775
        %796 = vst.msk [vmem:[#allocation4] sm:$0xff] %vm554, %v794
        %797 = vst.msk [vmem:[#allocation4 + $0x8] sm:$0xff] %vm554, %v795
        %798 = vst.msk [vmem:[#allocation2] sm:$0x1] %vm629, %v573
        %799 = vst.msk [vmem:[#allocation2 + $0x1] sm:$0x1] %vm629, %v574
        // Predicated region
        $region49: #{tpu_custom_call.1} parent=31 // pred_check
          %p800 = pneg %p311
        $region50: #{tpu_custom_call.1} parent=31 // pred_check_branch
          %802 = sbr.rel (%p800) target = $region52
        $region51: #{tpu_custom_call.1} parent=31 // pred_region
          %v803 = vld [vmem:[#allocation4] sm:$0xff]
          %v804 = vld [vmem:[#allocation4 + $0x8] sm:$0xff]
          %v805 = vld [vmem:[#allocation3] sm:$0x1]
          %v806 = vld [vmem:[#allocation3 + $0x1] sm:$0x1]
          %v807 = vrcp.pop %v805
          %v808 = vrcp.pop %v806
          %v811 = vlaneseq
          %v812 = vshrl.u32 %v811, 7
          %v813 = vsub.s32 0, %v812
          %v814 = vrot.slane %v807, %v813
          %v815 = vlaneseq
          %v816 = vshrl.u32 %v815, 7
          %v817 = vsub.s32 0, %v816
          %v818 = vrot.slane %v808, %v817
          %v821 = vmul.f32 %v803, %v814
          %v822 = vmul.f32 %v804, %v818
          %823 = vst.msk [vmem:[%s300] sm:$0xff] %vm554, %v821
          %824 = vst.msk [vmem:[%s300 + $0x8] sm:$0xff] %vm554, %v822
        $region52: #{tpu_custom_call.1} parent=31 // pred_fallthru
          _
        %s825 = sand.u32 %s136, 1
        %s826 = scalar_lea.sflag [#allocation7], %s825
        %s827 = sand.u32 %s136, 1
        %s828 = smul.addr %s827, 16
        %s829 = scalar_lea.vmem [#allocation11], %s828
        // Predicated region
        $region53: #{tpu_custom_call.1} parent=31 // pred_check
          %p830 = pneg %p146
        $region54: #{tpu_custom_call.1} parent=31 // pred_check_branch
          %832 = sbr.rel (%p830) target = $region56
        $region55: #{tpu_custom_call.1} parent=31 // pred_region
          %s833 = smul.u32 2, %s28
          %s835 = ssub.s32 256, 256
          %836 = vsyncadd %s826, %s835
          %s837 = sadd.s32 %s29, %s833
          %s838 = smul.addr %s837, 128
          %s839 = scalar_lea.hbm %s3, %s838
          %s840 = sshll.u32 %s829, 4
          %s841 = int_to_ptr.vmem [resolvable:$true] %s840
          %846 = dma.vmem_to_hbm [thread:$0]  %s841, 256, %s839, %s826, 128, 128, 8
        $region56: #{tpu_custom_call.1} parent=31 // pred_fallthru
          _
      $region32: #{tpu_custom_call.1} parent=5 // pred_fallthru
        _
      %p847 = scmp.le.s32.totalorder 2, %s18
      // Predicated region
      $region57: #{tpu_custom_call.1} parent=5 // pred_check
        %p848 = pneg %p847
      $region58: #{tpu_custom_call.1} parent=5 // pred_check_branch
        %850 = sbr.rel (%p848) target = $region60
      $region59: #{tpu_custom_call.1} parent=5 // pred_region
        %s851 = ssub.s32 %s18, 2
        // Predicated region
        $region61: #{tpu_custom_call.1} parent=59 // pred_check
          %p852 = pneg %p152
        $region62: #{tpu_custom_call.1} parent=59 // pred_check_branch
          %854 = sbr.rel (%p852) target = $region64
        $region63: #{tpu_custom_call.1} parent=59 // pred_region
          %s855 = sand.u32 %s137, 1
          %s856 = scalar_lea.sflag [#allocation7], %s855
          %s857 = sand.u32 %s137, 1
          %s858 = smul.addr %s857, 16
          %s859 = scalar_lea.vmem [#allocation11], %s858
          %860 = dma.done %s856, 256
        $region64: #{tpu_custom_call.1} parent=59 // pred_fallthru
          _
      $region60: #{tpu_custom_call.1} parent=5 // pred_fallthru
        _
    $region6: #{tpu_custom_call.1} parent=1 // loop_footer
      %s22 = sadd.s32 1, %s18
    $region7: #{tpu_custom_call.1} parent=1 // loop_footer_branch
      %17 = sbr.rel target = $region3
    $region8: #{tpu_custom_call.1} parent=1 // loop_exit
      _
    %861 = vsyncpa [#allocation6], 1
    %s862 = scalar_lea.sflag [#allocation6], 1
    %863 = vsyncpa %s862, 1
    %864 = vsyncpa [#allocation9], 1
    %s865 = scalar_lea.sflag [#allocation9], 1
    %866 = vsyncpa %s865, 1
    %867 = vsyncpa [#allocation7], 1
    %s868 = scalar_lea.sflag [#allocation7], 1
    %869 = vsyncpa %s868, 1

</llo_original>
